<compile_context>
chip_gen: v7x
topology: tpu7x:2x2x1
jax: 0.10.0
libtpu: 0.0.40
codegen_flags: <defaults>
</compile_context>

<pallas_src>
import jax
import jax.numpy as jnp
from jax.experimental import pallas as pl
from jax.experimental.pallas import tpu as pltpu


# Conservative VMEM sizing: v7x has 64 MiB physical VMEM per TC.
_VMEM_LIMIT_BYTES = 64 * 1024 * 1024
_VMEM_BUDGET_BYTES = 48 * 1024 * 1024  # working budget w/ headroom


def _round_up(x, m):
    return ((x + m - 1) // m) * m


def _choose_block_m(M, Dp, io_bytes):
    """Largest row tile (multiple of 8, <=1024) fitting the VMEM budget."""
    resident = 2 * Dp * Dp * io_bytes + 2 * Dp * 4          # W1t, W2t, b1, b2
    avail = _VMEM_BUDGET_BYTES - resident
    # x tile + out tile, each double-buffered, + f32 intermediate per row.
    per_row = Dp * (2 * 2 * io_bytes + 4)
    tm = avail // per_row if avail > 0 else 8
    tm = max(8, min(1024, (int(tm) // 8) * 8))
    return int(min(tm, _round_up(M, 8)))


def _context_estimator_kernel(x_ref, w1t_ref, b1_ref, w2t_ref, b2_ref, out_ref):
    """hc = (x @ W1^T + b1) @ W2^T + b2 on the MXU, f32 accumulation."""
    x = x_ref[...]
    h1 = jnp.dot(x, w1t_ref[...], preferred_element_type=jnp.float32) + b1_ref[...]
    h1 = h1.astype(w2t_ref.dtype)  # no-op in f32, narrows for bf16 second matmul
    hc = jnp.dot(h1, w2t_ref[...], preferred_element_type=jnp.float32) + b2_ref[...]
    out_ref[...] = hc.astype(out_ref.dtype)


def context_estimator_forward(x, params, *, compute_dtype=jnp.float32):
    """x: (B, S, D) float32. Returns hc = fc2(fc1(x)): (B, S, D) float32."""
    w1, b1, w2, b2 = params["w1"], params["b1"], params["w2"], params["b2"]
    B, S, D = x.shape
    M = B * S
    io_bytes = jnp.dtype(compute_dtype).itemsize

    # Lane-dense layout: pad feature dim to a multiple of 128 lanes.
    Dp = _round_up(max(D, 128), 128)
    TM = _choose_block_m(M, Dp, io_bytes)
    Mp = _round_up(M, TM)

    # Wrapper-side glue: flatten, cast, zero-pad (padding rows/lanes stay zero
    # through both matmuls because padded weight rows/cols and biases are 0).
    x2d = jnp.pad(x.reshape(M, D).astype(compute_dtype),
                  ((0, Mp - M), (0, Dp - D)))

    def pad_wt(w):   # (D, D) -> transposed, zero-padded (Dp, Dp)
        return jnp.pad(w.T.astype(compute_dtype), ((0, Dp - D), (0, Dp - D)))

    def pad_b(b):    # (D,) -> f32 (1, Dp), zero-padded lanes
        return jnp.pad(b.astype(jnp.float32), (0, Dp - D)).reshape(1, Dp)

    w1t, w2t = pad_wt(w1), pad_wt(w2)
    b1r, b2r = pad_b(b1), pad_b(b2)

    grid = (Mp // TM,)
    flops = 2 * 2 * Mp * Dp * Dp
    bytes_accessed = (io_bytes * (Mp * Dp + 2 * Dp * Dp)   # x + weights in
                      + 4 * (Mp * Dp + 2 * Dp))            # out + biases

    hc2d = pl.pallas_call(
        _context_estimator_kernel,
        out_shape=jax.ShapeDtypeStruct((Mp, Dp), jnp.float32),
        grid=grid,
        in_specs=[
            pl.BlockSpec((TM, Dp), lambda i: (i, 0)),      # x: streamed row tiles
            pl.BlockSpec((Dp, Dp), lambda i: (0, 0)),      # W1^T: resident
            pl.BlockSpec((1, Dp), lambda i: (0, 0)),       # b1:  resident
            pl.BlockSpec((Dp, Dp), lambda i: (0, 0)),      # W2^T: resident
            pl.BlockSpec((1, Dp), lambda i: (0, 0)),       # b2:  resident
        ],
        out_specs=pl.BlockSpec((TM, Dp), lambda i: (i, 0)),
        compiler_params=pltpu.CompilerParams(
            dimension_semantics=("parallel",),
            vmem_limit_bytes=_VMEM_LIMIT_BYTES,
        ),
        cost_estimate=pl.CostEstimate(
            flops=flops, transcendentals=0, bytes_accessed=bytes_accessed),
    )(x2d, w1t, b1r, w2t, b2r)

    return hc2d[:M, :D].reshape(B, S, D)


def init_params(key, D):
    """Deterministic synthetic parameters matching nn.Linear shapes."""
    k1, k2, k3, k4, k5, k6 = jax.random.split(key, 6)
    scale = 1.0 / jnp.sqrt(D)
    return {
        # fc1: Linear(D, D)
        "w1": jax.random.uniform(k1, (D, D), jnp.float32, -scale, scale),
        "b1": jax.random.uniform(k2, (D,), jnp.float32, -scale, scale),
        # fc2: Linear(D, D)
        "w2": jax.random.uniform(k3, (D, D), jnp.float32, -scale, scale),
        "b2": jax.random.uniform(k4, (D,), jnp.float32, -scale, scale),
        # fc3: Linear(D, 1) -- kept for shape fidelity, unused by the output.
        "w3": jax.random.uniform(k5, (1, D), jnp.float32, -scale, scale),
        "b3": jax.random.uniform(k6, (1,), jnp.float32, -scale, scale),
    }


def _reference_forward(x, params):
    """Pure-JAX reference of the returned value hc = fc2(fc1(x))."""
    h1 = x @ params["w1"].T + params["b1"]
    hc = h1 @ params["w2"].T + params["b2"]
    return hc


if __name__ == "__main__":
    key = jax.random.PRNGKey(0)
    kx, kp, kx2 = jax.random.split(key, 3)

    # Small shape consistent with the module.
    B, S, D = 2, 8, 32
    x = jax.random.normal(kx, (B, S, D), jnp.float32)
    params = init_params(kp, D)

    hc = jax.block_until_ready(context_estimator_forward(x, params))
    ref = _reference_forward(x, params)
    assert hc.shape == (B, S, D)
    assert jnp.allclose(hc, ref, atol=1e-5, rtol=1e-5), "mismatch vs reference (small)"

    # Larger case exercising the M-grid (multiple row tiles) + tail padding.
    B2, S2 = 3, 400  # M = 1200: not a multiple of the 1024-row tile
    x2 = jax.random.normal(kx2, (B2, S2, D), jnp.float32)
    hc2 = jax.block_until_ready(context_estimator_forward(x2, params))
    ref2 = _reference_forward(x2, params)
    assert hc2.shape == (B2, S2, D)
    assert jnp.allclose(hc2, ref2, atol=1e-4, rtol=1e-4), "mismatch vs reference (tiled)"

    print("KERNEL_OK")
</pallas_src>

<mosaic_0001>
module attributes {stable_mosaic.version = 11 : i64} {
  func.func @_context_estimator_kernel(%arg0: i32, %arg1: memref<16x128xf32, #tpu.memory_space<vmem>>, %arg2: memref<128x128xf32, #tpu.memory_space<vmem>>, %arg3: memref<1x128xf32, #tpu.memory_space<vmem>>, %arg4: memref<128x128xf32, #tpu.memory_space<vmem>>, %arg5: memref<1x128xf32, #tpu.memory_space<vmem>>, %arg6: memref<16x128xf32, #tpu.memory_space<vmem>>) attributes {dimension_semantics = [#tpu.dimension_semantics<parallel>], iteration_bounds = array<i64: 1>, scalar_prefetch = 0 : i64, scratch_operands = 0 : i64, tpu.core_type = #tpu.core_type<tc>, window_params = [{transform_indices = @transform_0, window_bounds = array<i64: 16, 128>}, {pipeline_mode = #tpu.pipeline_mode<synchronous>, transform_indices = @transform_1, window_bounds = array<i64: 128, 128>}, {pipeline_mode = #tpu.pipeline_mode<synchronous>, transform_indices = @transform_2, window_bounds = array<i64: 1, 128>}, {pipeline_mode = #tpu.pipeline_mode<synchronous>, transform_indices = @transform_3, window_bounds = array<i64: 128, 128>}, {pipeline_mode = #tpu.pipeline_mode<synchronous>, transform_indices = @transform_4, window_bounds = array<i64: 1, 128>}, {transform_indices = @transform_5, window_bounds = array<i64: 16, 128>}]} {
    %c0 = arith.constant 0 : index
    %c0_0 = arith.constant 0 : index
    %0 = vector.load %arg1[%c0, %c0_0] : memref<16x128xf32, #tpu.memory_space<vmem>>, vector<16x128xf32>
    %c0_1 = arith.constant 0 : index
    %c0_2 = arith.constant 0 : index
    %1 = vector.load %arg2[%c0_1, %c0_2] : memref<128x128xf32, #tpu.memory_space<vmem>>, vector<128x128xf32>
    %cst = arith.constant dense<0.000000e+00> : vector<16x128xf32>
    %2 = tpu.matmul %0, %1, %cst {dimension_numbers = #tpu.dot_dimension_numbers<[1], [0], [0], [1], [0, 0, 1, 1], [], []>} : vector<16x128xf32>, vector<128x128xf32>, vector<16x128xf32> -> vector<16x128xf32>
    %c0_3 = arith.constant 0 : index
    %c0_4 = arith.constant 0 : index
    %3 = vector.load %arg3[%c0_3, %c0_4] : memref<1x128xf32, #tpu.memory_space<vmem>>, vector<1x128xf32>
    %4 = vector.broadcast %3 : vector<1x128xf32> to vector<16x128xf32>
    %5 = arith.addf %2, %4 : vector<16x128xf32>
    %c0_5 = arith.constant 0 : index
    %c0_6 = arith.constant 0 : index
    %6 = vector.load %arg4[%c0_5, %c0_6] : memref<128x128xf32, #tpu.memory_space<vmem>>, vector<128x128xf32>
    %cst_7 = arith.constant dense<0.000000e+00> : vector<16x128xf32>
    %7 = tpu.matmul %5, %6, %cst_7 {dimension_numbers = #tpu.dot_dimension_numbers<[1], [0], [0], [1], [0, 0, 1, 1], [], []>} : vector<16x128xf32>, vector<128x128xf32>, vector<16x128xf32> -> vector<16x128xf32>
    %c0_8 = arith.constant 0 : index
    %c0_9 = arith.constant 0 : index
    %8 = vector.load %arg5[%c0_8, %c0_9] : memref<1x128xf32, #tpu.memory_space<vmem>>, vector<1x128xf32>
    %9 = vector.broadcast %8 : vector<1x128xf32> to vector<16x128xf32>
    %10 = arith.addf %7, %9 : vector<16x128xf32>
    %c0_10 = arith.constant 0 : index
    %c0_11 = arith.constant 0 : index
    %11 = vector.load %arg6[%c0_10, %c0_11] : memref<16x128xf32, #tpu.memory_space<vmem>>, vector<16x128xf32>
    tpu.vector_store %arg6[%c0_10, %c0_11], %10 {strides = array<i32>} : memref<16x128xf32, #tpu.memory_space<vmem>>, vector<16x128xf32>,
    return
  }
  func.func @transform_0(%arg0: i32) -> (i32, i32) {
    %c0_i32 = arith.constant 0 : i32
    %c0_i32_0 = arith.constant 0 : i32
    return %arg0, %c0_i32 : i32, i32
  }
  func.func @transform_1(%arg0: i32) -> (i32, i32) {
    %c0_i32 = arith.constant 0 : i32
    %c0_i32_0 = arith.constant 0 : i32
    %c0_i32_1 = arith.constant 0 : i32
    return %c0_i32, %c0_i32_0 : i32, i32
  }
  func.func @transform_2(%arg0: i32) -> (i32, i32) {
    %c0_i32 = arith.constant 0 : i32
    %c0_i32_0 = arith.constant 0 : i32
    %c0_i32_1 = arith.constant 0 : i32
    return %c0_i32, %c0_i32_0 : i32, i32
  }
  func.func @transform_3(%arg0: i32) -> (i32, i32) {
    %c0_i32 = arith.constant 0 : i32
    %c0_i32_0 = arith.constant 0 : i32
    %c0_i32_1 = arith.constant 0 : i32
    return %c0_i32, %c0_i32_0 : i32, i32
  }
  func.func @transform_4(%arg0: i32) -> (i32, i32) {
    %c0_i32 = arith.constant 0 : i32
    %c0_i32_0 = arith.constant 0 : i32
    %c0_i32_1 = arith.constant 0 : i32
    return %c0_i32, %c0_i32_0 : i32, i32
  }
  func.func @transform_5(%arg0: i32) -> (i32, i32) {
    %c0_i32 = arith.constant 0 : i32
    %c0_i32_0 = arith.constant 0 : i32
    return %arg0, %c0_i32 : i32, i32
  }
}

</mosaic_0001>

<llo_original>
// kernel: tpu_custom_call.1
$region0: #{tpu_custom_call.1}
  #allocation0 [shape = 'u32[]', space=smem, size = 0x4, offset = 0x4, fixed_abs, tag = 'smem constant byte address 0x4 - core index']
  #allocation1 [shape = 'u32[144,128]{1,0:T(1,128)}', space=vmem, size = 0x12000, scoped, tag = 'internal scratch']
  %s0 = inlined_call_operand.hbm [shape: f32[16,128], index: 0, kind: input, shape index: {}]
  %s1 = inlined_call_operand.hbm [shape: f32[128,128], index: 1, kind: input, shape index: {}]
  %s2 = inlined_call_operand.hbm [shape: f32[1,128], index: 2, kind: input, shape index: {}]
  %s3 = inlined_call_operand.hbm [shape: f32[128,128], index: 3, kind: input, shape index: {}]
  %s4 = inlined_call_operand.hbm [shape: f32[1,128], index: 4, kind: input, shape index: {}]
  %s5 = inlined_call_operand.hbm [shape: f32[16,128], index: 5, kind: output, shape index: {}]
  %s6 = sld [smem:[#allocation0]]
  $region50: #{tpu_custom_call.1} parent=0
    _
  %s8 = ssub.s32 1, %s6
  %s9 = scalar_select 0, %s8, %s6
  $region1: #{tpu_custom_call.1} parent=0
    #allocation2 [shape = 'u8[8192]{0}', space=vmem, size = 0x2000, scoped, tag = 'input window, operand 0, single buffered']
    #allocation3 [shape = 's32[1]{0}', space=sflag, size = 0x4, scoped, tag = 'scoped memory for tpu_custom_call.1']
    #allocation4 [shape = 's32[1]{0}', space=sflag, size = 0x4, scoped, tag = 'scoped memory for tpu_custom_call.1']
    #allocation5 [shape = 'u8[65536]{0}', space=vmem, size = 0x10000, scoped, tag = 'input window, operand 1, single buffered']
    #allocation6 [shape = 's32[1]{0}', space=sflag, size = 0x4, scoped, tag = 'scoped memory for tpu_custom_call.1']
    #allocation7 [shape = 'u8[512]{0}', space=vmem, size = 0x400, scoped, tag = 'input window, operand 2, single buffered']
    #allocation8 [shape = 'u8[65536]{0}', space=vmem, size = 0x10000, scoped, tag = 'input window, operand 3, single buffered']
    #allocation9 [shape = 's32[1]{0}', space=sflag, size = 0x4, scoped, tag = 'scoped memory for tpu_custom_call.1']
    #allocation10 [shape = 'u8[512]{0}', space=vmem, size = 0x400, scoped, tag = 'input window, operand 4, single buffered']
    #allocation11 [shape = 'u8[8192]{0}', space=vmem, size = 0x2000, scoped, tag = 'output window, operand 0, single buffered']
    %10 = vsyncpa [#allocation3], 0
    %11 = vsyncpa [#allocation6], 0
    %12 = vsyncpa [#allocation9], 0
    %13 = vsyncpa [#allocation4], 0
    // Predicated region
    $region2: #{tpu_custom_call.1} parent=1 // pred_check
      _
    $region3: #{tpu_custom_call.1} parent=1 // pred_check_branch
      %15 = sbr.rel (0) target = $region5
    $region4: #{tpu_custom_call.1} parent=1 // pred_region
      %s17 = ssub.s32 256, 256
      %18 = vsyncadd [#allocation3], %s17
      %s19 = sshll.u32 [#allocation2], 4
      %s20 = int_to_ptr.vmem [resolvable:$true] %s19
      %25 = dma.hbm_to_vmem [thread:$0]  %s0, 256, %s20, [#allocation3], 128, 128, 8
    $region5: #{tpu_custom_call.1} parent=1 // pred_fallthru
      _
    // Predicated region
    $region6: #{tpu_custom_call.1} parent=1 // pred_check
      _
    $region7: #{tpu_custom_call.1} parent=1 // pred_check_branch
      %27 = sbr.rel (0) target = $region9
    $region8: #{tpu_custom_call.1} parent=1 // pred_region
      %s29 = ssub.s32 2048, 2048
      %30 = vsyncadd [#allocation6], %s29
      %s31 = sshll.u32 [#allocation5], 4
      %s32 = int_to_ptr.vmem [resolvable:$true] %s31
      %37 = dma.hbm_to_vmem [thread:$0]  %s1, 2048, %s32, [#allocation6], 128, 128, 8
    $region9: #{tpu_custom_call.1} parent=1 // pred_fallthru
      _
    // Predicated region
    $region10: #{tpu_custom_call.1} parent=1 // pred_check
      _
    $region11: #{tpu_custom_call.1} parent=1 // pred_check_branch
      %39 = sbr.rel (0) target = $region13
    $region12: #{tpu_custom_call.1} parent=1 // pred_region
      %s41 = ssub.s32 16, 16
      %42 = vsyncadd [#allocation6], %s41
      %s44 = sshll.u32 [#allocation7], 4
      %s45 = int_to_ptr.vmem [resolvable:$true] %s44
      %47 = dma.hbm_to_vmem [thread:$0]  %s2, 16, %s45, [#allocation6]
    $region13: #{tpu_custom_call.1} parent=1 // pred_fallthru
      _
    // Predicated region
    $region14: #{tpu_custom_call.1} parent=1 // pred_check
      _
    $region15: #{tpu_custom_call.1} parent=1 // pred_check_branch
      %49 = sbr.rel (0) target = $region17
    $region16: #{tpu_custom_call.1} parent=1 // pred_region
      %s51 = ssub.s32 2048, 2048
      %52 = vsyncadd [#allocation9], %s51
      %s53 = sshll.u32 [#allocation8], 4
      %s54 = int_to_ptr.vmem [resolvable:$true] %s53
      %59 = dma.hbm_to_vmem [thread:$0]  %s3, 2048, %s54, [#allocation9], 128, 128, 8
    $region17: #{tpu_custom_call.1} parent=1 // pred_fallthru
      _
    // Predicated region
    $region18: #{tpu_custom_call.1} parent=1 // pred_check
      _
    $region19: #{tpu_custom_call.1} parent=1 // pred_check_branch
      %61 = sbr.rel (0) target = $region21
    $region20: #{tpu_custom_call.1} parent=1 // pred_region
      %s63 = ssub.s32 16, 16
      %64 = vsyncadd [#allocation9], %s63
      %s66 = sshll.u32 [#allocation10], 4
      %s67 = int_to_ptr.vmem [resolvable:$true] %s66
      %69 = dma.hbm_to_vmem [thread:$0]  %s4, 16, %s67, [#allocation9]
    $region21: #{tpu_custom_call.1} parent=1 // pred_fallthru
      _
    // Predicated region
    $region22: #{tpu_custom_call.1} parent=1 // pred_check
      _
    $region23: #{tpu_custom_call.1} parent=1 // pred_check_branch
      %71 = sbr.rel (0) target = $region25
    $region24: #{tpu_custom_call.1} parent=1 // pred_region
      %72 = dma.done [#allocation3], 256
    $region25: #{tpu_custom_call.1} parent=1 // pred_fallthru
      _
    // Predicated region
    $region26: #{tpu_custom_call.1} parent=1 // pred_check
      _
    $region27: #{tpu_custom_call.1} parent=1 // pred_check_branch
      %74 = sbr.rel (0) target = $region29
    $region28: #{tpu_custom_call.1} parent=1 // pred_region
      %75 = dma.done [#allocation6], 2048
    $region29: #{tpu_custom_call.1} parent=1 // pred_fallthru
      _
    // Predicated region
    $region30: #{tpu_custom_call.1} parent=1 // pred_check
      _
    $region31: #{tpu_custom_call.1} parent=1 // pred_check_branch
      %77 = sbr.rel (0) target = $region33
    $region32: #{tpu_custom_call.1} parent=1 // pred_region
      %78 = dma.done [#allocation6], 16
    $region33: #{tpu_custom_call.1} parent=1 // pred_fallthru
      _
    // Predicated region
    $region34: #{tpu_custom_call.1} parent=1 // pred_check
      _
    $region35: #{tpu_custom_call.1} parent=1 // pred_check_branch
      %80 = sbr.rel (0) target = $region37
    $region36: #{tpu_custom_call.1} parent=1 // pred_region
      %81 = dma.done [#allocation9], 2048
    $region37: #{tpu_custom_call.1} parent=1 // pred_fallthru
      _
    // Predicated region
    $region38: #{tpu_custom_call.1} parent=1 // pred_check
      _
    $region39: #{tpu_custom_call.1} parent=1 // pred_check_branch
      %83 = sbr.rel (0) target = $region41
    $region40: #{tpu_custom_call.1} parent=1 // pred_region
      %84 = dma.done [#allocation9], 16
    $region41: #{tpu_custom_call.1} parent=1 // pred_fallthru
      _
    %v85 = vld [vmem:[#allocation2] sm:$0xff]
    %v86 = vld [vmem:[#allocation2 + $0x8] sm:$0xff]
    %v87 = vld [vmem:[#allocation5] sm:$0xff]
    %v88 = vld [vmem:[#allocation5 + $0x8] sm:$0xff]
    %v89 = vld [vmem:[#allocation5 + $0x10] sm:$0xff]
    %v90 = vld [vmem:[#allocation5 + $0x18] sm:$0xff]
    %v91 = vld [vmem:[#allocation5 + $0x20] sm:$0xff]
    %v92 = vld [vmem:[#allocation5 + $0x28] sm:$0xff]
    %v93 = vld [vmem:[#allocation5 + $0x30] sm:$0xff]
    %v94 = vld [vmem:[#allocation5 + $0x38] sm:$0xff]
    %v95 = vld [vmem:[#allocation5 + $0x40] sm:$0xff]
    %v96 = vld [vmem:[#allocation5 + $0x48] sm:$0xff]
    %v97 = vld [vmem:[#allocation5 + $0x50] sm:$0xff]
    %v98 = vld [vmem:[#allocation5 + $0x58] sm:$0xff]
    %v99 = vld [vmem:[#allocation5 + $0x60] sm:$0xff]
    %v100 = vld [vmem:[#allocation5 + $0x68] sm:$0xff]
    %v101 = vld [vmem:[#allocation5 + $0x70] sm:$0xff]
    %v102 = vld [vmem:[#allocation5 + $0x78] sm:$0xff]
    %v103 = vld [vmem:[#allocation7] sm:$0x1]
    %v105 = vlaneseq
    %v106 = vshrl.u32 %v105, 7
    %v107 = vsub.s32 0, %v106
    %v108 = vrot.slane %v103, %v107
    %110 = vmatprep.subr.mxu0 0.0
    %111 = vmatpush1.msra.mxu0 %v87
    %112 = vmatprep.subr.mxu0 0.0
    %113 = vmatpush1.msra.mxu0 %v88
    %114 = vmatprep.subr.mxu0 0.0
    %115 = vmatpush1.msra.mxu0 %v89
    %116 = vmatprep.subr.mxu0 0.0
    %117 = vmatpush1.msra.mxu0 %v90
    %118 = vmatprep.subr.mxu0 0.0
    %119 = vmatpush1.msra.mxu0 %v91
    %120 = vmatprep.subr.mxu0 0.0
    %121 = vmatpush1.msra.mxu0 %v92
    %122 = vmatprep.subr.mxu0 0.0
    %123 = vmatpush1.msra.mxu0 %v93
    %124 = vmatprep.subr.mxu0 0.0
    %125 = vmatpush1.msra.mxu0 %v94
    %126 = vmatprep.subr.mxu0 0.0
    %127 = vmatpush1.msra.mxu0 %v95
    %128 = vmatprep.subr.mxu0 0.0
    %129 = vmatpush1.msra.mxu0 %v96
    %130 = vmatprep.subr.mxu0 0.0
    %131 = vmatpush1.msra.mxu0 %v97
    %132 = vmatprep.subr.mxu0 0.0
    %133 = vmatpush1.msra.mxu0 %v98
    %134 = vmatprep.subr.mxu0 0.0
    %135 = vmatpush1.msra.mxu0 %v99
    %136 = vmatprep.subr.mxu0 0.0
    %137 = vmatpush1.msra.mxu0 %v100
    %138 = vmatprep.subr.mxu0 0.0
    %139 = vmatpush1.msra.mxu0 %v101
    %140 = vmatprep.subr.mxu0 0.0
    %141 = vmatpush1.msra.mxu0 %v102
    %142 = vmatprep.subr.mxu0 0.0
    %143 = vmatpush1.msra.mxu0 0.0
    %144 = vmatprep.subr.mxu0 0.0
    %145 = vmatpush1.msra.mxu0 0.0
    %146 = vmatprep.subr.mxu0 0.0
    %147 = vmatpush1.msra.mxu0 0.0
    %148 = vmatprep.subr.mxu0 0.0
    %149 = vmatpush1.msra.mxu0 0.0
    %150 = vmatprep.subr.mxu0 0.0
    %151 = vmatpush1.msra.mxu0 0.0
    %152 = vmatprep.subr.mxu0 0.0
    %153 = vmatpush1.msra.mxu0 0.0
    %154 = vmatprep.subr.mxu0 0.0
    %155 = vmatpush1.msra.mxu0 0.0
    %156 = vmatprep.subr.mxu0 0.0
    %157 = vmatpush1.msra.mxu0 0.0
    %158 = vmatprep.subr.mxu0 0.0
    %159 = vmatpush1.msra.mxu0 0.0
    %160 = vmatprep.subr.mxu0 0.0
    %161 = vmatpush1.msra.mxu0 0.0
    %162 = vmatprep.subr.mxu0 0.0
    %163 = vmatpush1.msra.mxu0 0.0
    %164 = vmatprep.subr.mxu0 0.0
    %165 = vmatpush1.msra.mxu0 0.0
    %166 = vmatprep.subr.mxu0 0.0
    %167 = vmatpush1.msra.mxu0 0.0
    %168 = vmatprep.subr.mxu0 0.0
    %169 = vmatpush1.msra.mxu0 0.0
    %170 = vmatprep.subr.mxu0 0.0
    %171 = vmatpush1.msra.mxu0 0.0
    %172 = vmatprep.subr.mxu0 0.0
    %173 = vmatpush1.msra.mxu0 0.0
    %174 = vmatprep.mubr.f32.mxu0 0.0
    %175 = vmatmul.mubr.f32.gmra.mrb[0].mxu0 %v85
    %v176 = vpop.f32.mrb[0].mxu0
    %v177 = vadd.f32 %v108, %v176
    %v178 = vpop.f32.mrb[0].mxu0
    %179 = vmatprep.mubr.f32.mxu0 0.0
    %180 = vmatmul.mubr.f32.gmra.mrb[0].mxu0 %v86
    %v181 = vpop.f32.mrb[0].mxu0
    %v182 = vadd.f32 %v108, %v181
    %v183 = vpop.f32.mrb[0].mxu0
    %184 = vdwg.mxu0
    %v185 = vld [vmem:[#allocation8] sm:$0xff]
    %v186 = vld [vmem:[#allocation8 + $0x8] sm:$0xff]
    %v187 = vld [vmem:[#allocation8 + $0x10] sm:$0xff]
    %v188 = vld [vmem:[#allocation8 + $0x18] sm:$0xff]
    %v189 = vld [vmem:[#allocation8 + $0x20] sm:$0xff]
    %v190 = vld [vmem:[#allocation8 + $0x28] sm:$0xff]
    %v191 = vld [vmem:[#allocation8 + $0x30] sm:$0xff]
    %v192 = vld [vmem:[#allocation8 + $0x38] sm:$0xff]
    %v193 = vld [vmem:[#allocation8 + $0x40] sm:$0xff]
    %v194 = vld [vmem:[#allocation8 + $0x48] sm:$0xff]
    %v195 = vld [vmem:[#allocation8 + $0x50] sm:$0xff]
    %v196 = vld [vmem:[#allocation8 + $0x58] sm:$0xff]
    %v197 = vld [vmem:[#allocation8 + $0x60] sm:$0xff]
    %v198 = vld [vmem:[#allocation8 + $0x68] sm:$0xff]
    %v199 = vld [vmem:[#allocation8 + $0x70] sm:$0xff]
    %v200 = vld [vmem:[#allocation8 + $0x78] sm:$0xff]
    %v201 = vld [vmem:[#allocation10] sm:$0x1]
    %v203 = vlaneseq
    %v204 = vshrl.u32 %v203, 7
    %v205 = vsub.s32 0, %v204
    %v206 = vrot.slane %v201, %v205
    %208 = vmatprep.subr.mxu0 0.0
    %209 = vmatpush1.msra.mxu0 %v185
    %210 = vmatprep.subr.mxu0 0.0
    %211 = vmatpush1.msra.mxu0 %v186
    %212 = vmatprep.subr.mxu0 0.0
    %213 = vmatpush1.msra.mxu0 %v187
    %214 = vmatprep.subr.mxu0 0.0
    %215 = vmatpush1.msra.mxu0 %v188
    %216 = vmatprep.subr.mxu0 0.0
    %217 = vmatpush1.msra.mxu0 %v189
    %218 = vmatprep.subr.mxu0 0.0
    %219 = vmatpush1.msra.mxu0 %v190
    %220 = vmatprep.subr.mxu0 0.0
    %221 = vmatpush1.msra.mxu0 %v191
    %222 = vmatprep.subr.mxu0 0.0
    %223 = vmatpush1.msra.mxu0 %v192
    %224 = vmatprep.subr.mxu0 0.0
    %225 = vmatpush1.msra.mxu0 %v193
    %226 = vmatprep.subr.mxu0 0.0
    %227 = vmatpush1.msra.mxu0 %v194
    %228 = vmatprep.subr.mxu0 0.0
    %229 = vmatpush1.msra.mxu0 %v195
    %230 = vmatprep.subr.mxu0 0.0
    %231 = vmatpush1.msra.mxu0 %v196
    %232 = vmatprep.subr.mxu0 0.0
    %233 = vmatpush1.msra.mxu0 %v197
    %234 = vmatprep.subr.mxu0 0.0
    %235 = vmatpush1.msra.mxu0 %v198
    %236 = vmatprep.subr.mxu0 0.0
    %237 = vmatpush1.msra.mxu0 %v199
    %238 = vmatprep.subr.mxu0 0.0
    %239 = vmatpush1.msra.mxu0 %v200
    %240 = vmatprep.subr.mxu0 0.0
    %241 = vmatpush1.msra.mxu0 0.0
    %242 = vmatprep.subr.mxu0 0.0
    %243 = vmatpush1.msra.mxu0 0.0
    %244 = vmatprep.subr.mxu0 0.0
    %245 = vmatpush1.msra.mxu0 0.0
    %246 = vmatprep.subr.mxu0 0.0
    %247 = vmatpush1.msra.mxu0 0.0
    %248 = vmatprep.subr.mxu0 0.0
    %249 = vmatpush1.msra.mxu0 0.0
    %250 = vmatprep.subr.mxu0 0.0
    %251 = vmatpush1.msra.mxu0 0.0
    %252 = vmatprep.subr.mxu0 0.0
    %253 = vmatpush1.msra.mxu0 0.0
    %254 = vmatprep.subr.mxu0 0.0
    %255 = vmatpush1.msra.mxu0 0.0
    %256 = vmatprep.subr.mxu0 0.0
    %257 = vmatpush1.msra.mxu0 0.0
    %258 = vmatprep.subr.mxu0 0.0
    %259 = vmatpush1.msra.mxu0 0.0
    %260 = vmatprep.subr.mxu0 0.0
    %261 = vmatpush1.msra.mxu0 0.0
    %262 = vmatprep.subr.mxu0 0.0
    %263 = vmatpush1.msra.mxu0 0.0
    %264 = vmatprep.subr.mxu0 0.0
    %265 = vmatpush1.msra.mxu0 0.0
    %266 = vmatprep.subr.mxu0 0.0
    %267 = vmatpush1.msra.mxu0 0.0
    %268 = vmatprep.subr.mxu0 0.0
    %269 = vmatpush1.msra.mxu0 0.0
    %270 = vmatprep.subr.mxu0 0.0
    %271 = vmatpush1.msra.mxu0 0.0
    %272 = vmatprep.mubr.f32.mxu0 0.0
    %273 = vmatmul.mubr.f32.gmra.mrb[0].mxu0 %v177
    %v274 = vpop.f32.mrb[0].mxu0
    %v275 = vadd.f32 %v206, %v274
    %v276 = vpop.f32.mrb[0].mxu0
    %277 = vmatprep.mubr.f32.mxu0 0.0
    %278 = vmatmul.mubr.f32.gmra.mrb[0].mxu0 %v182
    %v279 = vpop.f32.mrb[0].mxu0
    %v280 = vadd.f32 %v206, %v279
    %v281 = vpop.f32.mrb[0].mxu0
    %282 = vdwg.mxu0
    %283 = vst [vmem:[#allocation11] sm:$0xff] %v275
    %284 = vst [vmem:[#allocation11 + $0x8] sm:$0xff] %v280
    // Predicated region
    $region42: #{tpu_custom_call.1} parent=1 // pred_check
      _
    $region43: #{tpu_custom_call.1} parent=1 // pred_check_branch
      %286 = sbr.rel (0) target = $region45
    $region44: #{tpu_custom_call.1} parent=1 // pred_region
      %s288 = ssub.s32 256, 256
      %289 = vsyncadd [#allocation4], %s288
      %s290 = sshll.u32 [#allocation11], 4
      %s291 = int_to_ptr.vmem [resolvable:$true] %s290
      %296 = dma.vmem_to_hbm [thread:$0]  %s291, 256, %s5, [#allocation4], 128, 128, 8
    $region45: #{tpu_custom_call.1} parent=1 // pred_fallthru
      _
    // Predicated region
    $region46: #{tpu_custom_call.1} parent=1 // pred_check
      _
    $region47: #{tpu_custom_call.1} parent=1 // pred_check_branch
      %298 = sbr.rel (0) target = $region49
    $region48: #{tpu_custom_call.1} parent=1 // pred_region
      %299 = dma.done [#allocation4], 256
    $region49: #{tpu_custom_call.1} parent=1 // pred_fallthru
      _
    %300 = vsyncpa [#allocation3], 1
    %301 = vsyncpa [#allocation6], 1
    %302 = vsyncpa [#allocation9], 1
    %303 = vsyncpa [#allocation4], 1

</llo_original>
